<compile_context>
chip_gen: v7x
topology: tpu7x:2x2x1
jax: 0.10.0
libtpu: 0.0.40
codegen_flags: <defaults>
</compile_context>

<pallas_src>
import math

import jax
import jax.numpy as jnp
from jax.experimental import pallas as pl
from jax.experimental.pallas import tpu as pltpu


# ---------------------------------------------------------------------------
# Kernel: elementwise broadcast add.  b_ref is (1, bl) (per-column bias) or
# (br, 1) (per-row bias); jnp broadcasting covers both.
# ---------------------------------------------------------------------------
def _add_bias_kernel(x_ref, b_ref, o_ref):
    o_ref[...] = x_ref[...] + b_ref[...]


# ---------------------------------------------------------------------------
# Tiling helpers
# ---------------------------------------------------------------------------
_SUBLANE_TARGET = 512            # target rows per block
_LANE_TARGET = 2048              # target lanes per block (f32 -> ~4 MiB/block)
_FOLD_LANE_TARGET = 512          # lane width we aim for when folding rows
_VMEM_LIMIT = 48 << 20           # raised scoped VMEM: inside v7x 64 MiB physical,
                                 # ample headroom on v5e/v6e (128 MiB physical)
_MULTICORE_MIN_BYTES = 64 << 10  # only force a >= 2-block grid above this size


def _round_up(x, a):
    return ((x + a - 1) // a) * a


def _sublane_align(dtype):
    # Native tiling: (8,128) for 4-byte, (16,128) for 2-byte, (32,128) for 1-byte.
    return 8 * max(1, 4 // dtype.itemsize)


def _balanced_block(dim, target, align):
    """Full dim if it fits the target, else a balanced aligned block ~<= target."""
    if dim <= target:
        return dim                        # equal to the full array dim -> legal
    nblk = pl.cdiv(dim, target)
    return min(_round_up(pl.cdiv(dim, nblk), align), dim)


def _ensure_multicore(r, br, l, bl, sub_align, nbytes):
    """Guarantee >= 2 blocks on a 'parallel' axis so both v7x TCs get work."""
    if nbytes < _MULTICORE_MIN_BYTES:
        return br, bl                     # tiny input: not worth an extra step
    if pl.cdiv(r, br) * pl.cdiv(l, bl) >= 2:
        return br, bl
    if r > sub_align:
        return _round_up(pl.cdiv(r, 2), sub_align), bl
    if l > 128:
        return br, _round_up(pl.cdiv(l, 2), 128)
    return br, bl


def _compiler_params():
    return pltpu.CompilerParams(
        dimension_semantics=("parallel", "parallel"),
        vmem_limit_bytes=_VMEM_LIMIT,
    )


def _cost(x2, bias_arr):
    # One add per element; streaming read + write of x plus the small bias.
    return pl.CostEstimate(
        flops=x2.size,
        transcendentals=0,
        bytes_accessed=2 * x2.size * x2.dtype.itemsize
        + bias_arr.size * bias_arr.dtype.itemsize,
    )


def _tiled_broadcast_add(x2, bias_arr, *, bias_per_row):
    """x2: (R, L); bias_arr: (R, 1) if bias_per_row else (1, L)."""
    r, l = x2.shape
    sub_align = _sublane_align(x2.dtype)
    br = _balanced_block(r, _SUBLANE_TARGET, sub_align)
    bl = _balanced_block(l, _LANE_TARGET, 128)
    br, bl = _ensure_multicore(r, br, l, bl, sub_align,
                               x2.size * x2.dtype.itemsize)
    grid = (pl.cdiv(r, br), pl.cdiv(l, bl))

    if bias_per_row:
        # (br, 1) column; index_map depends only on i so the tiny bias DMA is
        # reissued only when the row block changes.
        bias_spec = pl.BlockSpec((br, 1), lambda i, j: (i, 0))
    else:
        # (1, bl) row; reissued only when the column block changes.
        bias_spec = pl.BlockSpec((1, bl), lambda i, j: (0, j))

    return pl.pallas_call(
        _add_bias_kernel,
        out_shape=jax.ShapeDtypeStruct((r, l), x2.dtype),
        grid=grid,
        in_specs=[pl.BlockSpec((br, bl), lambda i, j: (i, j)), bias_spec],
        out_specs=pl.BlockSpec((br, bl), lambda i, j: (i, j)),
        compiler_params=_compiler_params(),
        cost_estimate=_cost(x2, bias_arr),
        # TODO(synk): add input_output_aliases={0: 0} if the caller can donate x.
    )(x2, bias_arr)


def _add_bias_cols(x2, bias_row):
    """x2 (R, L) + bias_row (1, L), folding rows into lanes when L < 128."""
    orig_r, orig_l = x2.shape
    fold = 1
    if orig_l < 128:
        fold = max(1, _FOLD_LANE_TARGET // orig_l)
        # Prefer a fold factor that divides R (avoids a padding pass over x)
        # as long as the folded lane width still fills a full 128-lane vreg.
        g = math.gcd(orig_r, fold)
        if g * orig_l >= 128:
            fold = g
        r_pad = _round_up(orig_r, fold)
        if r_pad != orig_r:
            x2 = jnp.pad(x2, ((0, r_pad - orig_r), (0, 0)))
        x2 = x2.reshape(r_pad // fold, fold * orig_l)
        bias_row = jnp.tile(bias_row, (1, fold))

    out = _tiled_broadcast_add(x2, bias_row, bias_per_row=False)

    if fold > 1:
        out = out.reshape(-1, orig_l)[:orig_r]
    return out


# ---------------------------------------------------------------------------
# Wrapper: forward-pass of the PyTorch AddBias module.
# ---------------------------------------------------------------------------
def add_bias(x, bias_param):
    """bias_param has shape (C, 1) (nn.Parameter(bias.unsqueeze(1))) or (C,)."""
    # NOTE: bias is cast to x.dtype before the add (bf16 x + f32 bias -> bf16),
    # whereas PyTorch would promote to f32.  Kept intentionally consistent.
    bias_vec = bias_param.reshape(-1).astype(x.dtype)
    c = bias_vec.shape[0]

    if x.ndim == 2:
        if x.shape[1] != c:
            raise ValueError(f"x has {x.shape[1]} columns but bias has {c}")
        return _add_bias_cols(x, bias_vec.reshape(1, c))

    if x.ndim == 4:
        n, cc, h, w = x.shape
        if cc != c:
            raise ValueError(f"x has {cc} channels but bias has {c}")
        hw = h * w
        if hw >= 128:
            # Lane axis = spatial (>= 1 full vreg of lanes), sublane = N*C,
            # per-row bias column with N*C entries (row k -> bias[k % C]).
            x2 = x.reshape(n * c, hw)
            bias_col = jnp.tile(bias_vec.reshape(c, 1), (n, 1))
            out = _tiled_broadcast_add(x2, bias_col, bias_per_row=True)
        else:
            # Small spatial dims: fold channels (and batch, if needed, inside
            # _add_bias_cols) into the lane axis for full-width stores.
            x2 = x.reshape(n, c * hw)
            bias_row = jnp.repeat(bias_vec, hw).reshape(1, c * hw)
            out = _add_bias_cols(x2, bias_row)
        return out.reshape(n, c, h, w)

    raise ValueError(f"AddBias expects 2-D or 4-D input, got ndim={x.ndim}")


# ---------------------------------------------------------------------------
# Demo / self-test
# ---------------------------------------------------------------------------
if __name__ == "__main__":
    key = jax.random.PRNGKey(0)
    keys = jax.random.split(key, 8)

    C = 4
    bias_vec = jax.random.normal(keys[0], (C,), dtype=jnp.float32)
    bias_param = bias_vec[:, None]                       # (C, 1)

    # 4-D NCHW (batch=2, channels=4, spatial=16x16) — conv-feature use
    x4 = jax.random.normal(keys[1], (2, C, 16, 16), dtype=jnp.float32)
    y4 = jax.block_until_ready(add_bias(x4, bias_param))
    assert jnp.allclose(y4, x4 + bias_vec.reshape(1, C, 1, 1), atol=1e-6), "4-D mismatch"

    # 2-D (N, C) — typical RL action-logit use (C=4 -> lane-folded path)
    x2 = jax.random.normal(keys[2], (8, C), dtype=jnp.float32)
    y2 = jax.block_until_ready(add_bias(x2, bias_param))
    assert jnp.allclose(y2, x2 + bias_vec.reshape(1, C), atol=1e-6), "2-D mismatch"

    # bf16 x with f32 bias parameter
    y2b = jax.block_until_ready(add_bias(x2.astype(jnp.bfloat16), bias_param))
    assert y2b.dtype == jnp.bfloat16
    assert jnp.allclose(y2b.astype(jnp.float32), x2 + bias_vec.reshape(1, C),
                        atol=2e-2), "bf16 mismatch"

    # 4-D with small spatial dims (H*W < 128 -> channel/batch fold path)
    x4s = jax.random.normal(keys[3], (2, C, 4, 4), dtype=jnp.float32)
    y4s = jax.block_until_ready(add_bias(x4s, bias_param))
    assert jnp.allclose(y4s, x4s + bias_vec.reshape(1, C, 1, 1), atol=1e-6), "small 4-D mismatch"

    # Multi-block 2-D (balanced tiling + ragged edge blocks)
    Cb = 1300
    bias_big = jax.random.normal(keys[4], (Cb,), dtype=jnp.float32)[:, None]
    xb2 = jax.random.normal(keys[5], (600, Cb), dtype=jnp.float32)
    yb2 = jax.block_until_ready(add_bias(xb2, bias_big))
    assert jnp.allclose(yb2, xb2 + bias_big.T, atol=1e-6), "tiled 2-D mismatch"

    # Narrow-C, larger-N 2-D (lane folding with padding)
    xn2 = jax.random.normal(keys[6], (1030, C), dtype=jnp.float32)
    yn2 = jax.block_until_ready(add_bias(xn2, bias_param))
    assert jnp.allclose(yn2, xn2 + bias_vec.reshape(1, C), atol=1e-6), "folded 2-D mismatch"

    # Multi-block 4-D (per-row-bias path)
    Cc = 300
    bias_c = bias_big[:Cc]
    xb4 = jax.random.normal(keys[7], (2, Cc, 40, 40), dtype=jnp.float32)
    yb4 = jax.block_until_ready(add_bias(xb4, bias_c))
    assert jnp.allclose(yb4, xb4 + bias_c.reshape(1, Cc, 1, 1), atol=1e-6), "tiled 4-D mismatch"

    print("KERNEL_OK")
</pallas_src>

<mosaic_0001>
module attributes {stable_mosaic.version = 11 : i64} {
  func.func @_add_bias_kernel(%arg0: i32, %arg1: i32, %arg2: memref<8x256xf32, #tpu.memory_space<vmem>>, %arg3: memref<8x1xf32, #tpu.memory_space<vmem>>, %arg4: memref<8x256xf32, #tpu.memory_space<vmem>>) attributes {dimension_semantics = [#tpu.dimension_semantics<parallel>, #tpu.dimension_semantics<parallel>], iteration_bounds = array<i64: 1, 1>, scalar_prefetch = 0 : i64, scratch_operands = 0 : i64, tpu.core_type = #tpu.core_type<tc>, window_params = [{transform_indices = @transform_0, window_bounds = array<i64: 8, 256>}, {transform_indices = @transform_1, window_bounds = array<i64: 8, 1>}, {transform_indices = @transform_2, window_bounds = array<i64: 8, 256>}]} {
    %c0 = arith.constant 0 : index
    %c0_0 = arith.constant 0 : index
    %0 = vector.load %arg2[%c0, %c0_0] : memref<8x256xf32, #tpu.memory_space<vmem>>, vector<8x256xf32>
    %c0_1 = arith.constant 0 : index
    %c0_2 = arith.constant 0 : index
    %1 = vector.load %arg3[%c0_1, %c0_2] : memref<8x1xf32, #tpu.memory_space<vmem>>, vector<8x1xf32>
    %2 = vector.broadcast %1 : vector<8x1xf32> to vector<8x256xf32>
    %3 = arith.addf %0, %2 : vector<8x256xf32>
    %c0_3 = arith.constant 0 : index
    %c0_4 = arith.constant 0 : index
    %4 = vector.load %arg4[%c0_3, %c0_4] : memref<8x256xf32, #tpu.memory_space<vmem>>, vector<8x256xf32>
    tpu.vector_store %arg4[%c0_3, %c0_4], %3 {strides = array<i32>} : memref<8x256xf32, #tpu.memory_space<vmem>>, vector<8x256xf32>,
    return
  }
  func.func @transform_0(%arg0: i32, %arg1: i32) -> (i32, i32) {
    %c0_i32 = arith.constant 0 : i32
    return %arg0, %arg1 : i32, i32
  }
  func.func @transform_1(%arg0: i32, %arg1: i32) -> (i32, i32) {
    %c0_i32 = arith.constant 0 : i32
    %c0_i32_0 = arith.constant 0 : i32
    return %arg0, %c0_i32 : i32, i32
  }
  func.func @transform_2(%arg0: i32, %arg1: i32) -> (i32, i32) {
    %c0_i32 = arith.constant 0 : i32
    return %arg0, %arg1 : i32, i32
  }
}

</mosaic_0001>

<llo_original>
// kernel: tpu_custom_call.1
$region0: #{tpu_custom_call.1}
  #allocation0 [shape = 'u32[]', space=smem, size = 0x4, offset = 0x4, fixed_abs, tag = 'smem constant byte address 0x4 - core index']
  #allocation1 [shape = 'u32[144,128]{1,0:T(1,128)}', space=vmem, size = 0x12000, scoped, tag = 'internal scratch']
  %s0 = inlined_call_operand.hbm [shape: f32[8,256], index: 0, kind: input, shape index: {}]
  %s1 = inlined_call_operand.vmem [shape: f32[8,1], index: 1, kind: input, shape index: {}]
  %s2 = inlined_call_operand.hbm [shape: f32[8,256], index: 2, kind: output, shape index: {}]
  %s3 = sld [smem:[#allocation0]]
  $region22: #{tpu_custom_call.1} parent=0
    _
  %s5 = ssub.s32 1, %s3
  %s6 = scalar_select 0, %s5, %s3
  $region1: #{tpu_custom_call.1} parent=0
    #allocation2 [shape = 'u8[8192]{0}', space=vmem, size = 0x2000, scoped, tag = 'input window, operand 0, single buffered']
    #allocation3 [shape = 's32[1]{0}', space=sflag, size = 0x4, scoped, tag = 'scoped memory for tpu_custom_call.1']
    #allocation4 [shape = 's32[1]{0}', space=sflag, size = 0x4, scoped, tag = 'scoped memory for tpu_custom_call.1']
    #allocation5 [shape = 'u8[8192]{0}', space=vmem, size = 0x2000, scoped, tag = 'output window, operand 0, single buffered']
    %7 = vsyncpa [#allocation3], 0
    %8 = vsyncpa [#allocation4], 0
    // Predicated region
    $region2: #{tpu_custom_call.1} parent=1 // pred_check
      _
    $region3: #{tpu_custom_call.1} parent=1 // pred_check_branch
      %10 = sbr.rel (0) target = $region5
    $region4: #{tpu_custom_call.1} parent=1 // pred_region
      %s12 = ssub.s32 256, 256
      %13 = vsyncadd [#allocation3], %s12
      %s15 = sshll.u32 [#allocation2], 4
      %s16 = int_to_ptr.vmem [resolvable:$true] %s15
      %18 = dma.hbm_to_vmem [thread:$0]  %s0, 256, %s16, [#allocation3]
    $region5: #{tpu_custom_call.1} parent=1 // pred_fallthru
      _
    // Predicated region
    $region6: #{tpu_custom_call.1} parent=1 // pred_check
      _
    $region7: #{tpu_custom_call.1} parent=1 // pred_check_branch
      %20 = sbr.rel (0) target = $region9
    $region8: #{tpu_custom_call.1} parent=1 // pred_region
      _
    $region9: #{tpu_custom_call.1} parent=1 // pred_fallthru
      _
    // Predicated region
    $region10: #{tpu_custom_call.1} parent=1 // pred_check
      _
    $region11: #{tpu_custom_call.1} parent=1 // pred_check_branch
      %22 = sbr.rel (0) target = $region13
    $region12: #{tpu_custom_call.1} parent=1 // pred_region
      %23 = dma.done [#allocation3], 256
    $region13: #{tpu_custom_call.1} parent=1 // pred_fallthru
      _
    %v24 = vld [vmem:[#allocation2] sm:$0xff]
    %v25 = vld [vmem:[#allocation2 + $0x8] sm:$0xff]
    %v26 = vld [vmem:[%s1] sm:$0xff]
    %28 = vset.pattern.permute.xlu0 0
    %29 = vperm.xlu0 %28, %v26
    %v30 = vpop.permute.xlu0 %29
    %v32 = vadd.f32 %v24, %v30
    %v33 = vadd.f32 %v25, %v30
    %34 = vst [vmem:[#allocation5] sm:$0xff] %v32
    %35 = vst [vmem:[#allocation5 + $0x8] sm:$0xff] %v33
    // Predicated region
    $region14: #{tpu_custom_call.1} parent=1 // pred_check
      _
    $region15: #{tpu_custom_call.1} parent=1 // pred_check_branch
      %37 = sbr.rel (0) target = $region17
    $region16: #{tpu_custom_call.1} parent=1 // pred_region
      %s39 = ssub.s32 256, 256
      %40 = vsyncadd [#allocation4], %s39
      %s42 = sshll.u32 [#allocation5], 4
      %s43 = int_to_ptr.vmem [resolvable:$true] %s42
      %45 = dma.vmem_to_hbm [thread:$0]  %s43, 256, %s2, [#allocation4]
    $region17: #{tpu_custom_call.1} parent=1 // pred_fallthru
      _
    // Predicated region
    $region18: #{tpu_custom_call.1} parent=1 // pred_check
      _
    $region19: #{tpu_custom_call.1} parent=1 // pred_check_branch
      %47 = sbr.rel (0) target = $region21
    $region20: #{tpu_custom_call.1} parent=1 // pred_region
      %48 = dma.done [#allocation4], 256
    $region21: #{tpu_custom_call.1} parent=1 // pred_fallthru
      _
    %49 = vsyncpa [#allocation3], 1
    %50 = vsyncpa [#allocation4], 1

</llo_original>
